<compile_context>
chip_gen: v7x
topology: tpu7x:2x2x1
jax: 0.10.0
libtpu: 0.0.40
codegen_flags: <defaults>
</compile_context>

<pallas_src>
import jax
import jax.numpy as jnp
from jax.experimental import pallas as pl
from jax.experimental.pallas import tpu as pltpu

IN_F = 4      # fc1 in_features
HID_F = 7     # fc1 out_features / fc2 in_features
OUT_F = 3     # fc2 out_features
LANE = 128    # TPU lane width
SUB = 8       # TPU sublane count (f32)


def _round_up(x, m):
    return (x + m - 1) // m * m


def irisnet_kernel(w1_ref, b1_ref, w2_ref, b2_ref, x_ref, out_ref):
    # w1_ref (7,4), b1_ref (7,), w2_ref (3,7), b2_ref (3,): SMEM scalars.
    # x_ref  (IN_F,  ts, 128) VMEM block  (batch = rows x lanes, lane-dense).
    # out_ref(OUT_F, ts, 128) VMEM block.
    ts = x_ref.shape[1]
    ch = 32                       # (ch,128) slab per inner iteration (4 vregs / feature)
    while ts % ch:
        ch //= 2                  # ts is always a multiple of 8 -> ch ends in {8,16,32}

    # Hoisted scalar reads (59 SMEM loads per grid step, loop-invariant splats).
    w1 = [[w1_ref[j, k] for k in range(IN_F)] for j in range(HID_F)]
    b1 = [b1_ref[j] for j in range(HID_F)]
    w2 = [[w2_ref[m, j] for j in range(HID_F)] for m in range(OUT_F)]
    b2 = [b2_ref[m] for m in range(OUT_F)]

    @pl.loop(0, ts // ch)
    def _(c):
        r0 = pl.multiple_of(c * ch, ch)
        # Four lane-dense (ch,128) input slabs (cast up if I/O is bf16).
        xs = [x_ref[k, pl.ds(r0, ch), :].astype(jnp.float32) for k in range(IN_F)]
        # Accumulate fc2 as we go: only 3 accumulators + 4 inputs + temps stay live.
        accs = [jnp.full((ch, LANE), b2[m], jnp.float32) for m in range(OUT_F)]
        for j in range(HID_F):
            # fc1 row j: unrolled scalar-broadcast FMAs on the VPU (a K=4 MXU matmul
            # would leave the systolic array >95% idle).
            z = xs[0] * w1[j][0]
            for k in range(1, IN_F):
                z = z + xs[k] * w1[j][k]
            z = z + b1[j]
            # sigmoid: exp on the EUP, approx reciprocal (vrcp) on the EUP too.
            s = pl.reciprocal(1.0 + jnp.exp(-z), approx=True)
            for m in range(OUT_F):
                accs[m] = accs[m] + s * w2[m][j]
        for m in range(OUT_F):
            out_ref[m, pl.ds(r0, ch), :] = accs[m].astype(out_ref.dtype)


def irisnet_forward_fm(x_fm, w1, b1, w2, b2, *, io_dtype=jnp.float32, block_rows=2048):
    """Feature-major fast path.

    x_fm: (4, B) feature-major activations. Returns (3, B) feature-major logits.
    When B is already a multiple of 1024 there are NO wrapper-side HBM relayout
    passes (reshapes/slices are free) -- keep activations feature-major upstream and
    downstream of this op to stay at the kernel's ~28 B/sample HBM traffic.
    """
    f, batch = x_fm.shape
    assert f == IN_F, f"expected ({IN_F}, B) feature-major input, got {x_fm.shape}"
    itemsize = jnp.dtype(io_dtype).itemsize

    b_pad = _round_up(batch, SUB * LANE)      # pad only to whole (8,128) vregs
    s_pad = b_pad // LANE                     # sublane rows (multiple of 8)

    # Batch tile in sublane rows (128 samples each).  Large tiles amortize the
    # ~0.35us/step grid overhead; cap the double-buffered pipeline footprint
    # 2*(IN_F+OUT_F)*rows*128*itemsize at ~40 MiB so it fits v7x's 64 MiB/TC
    # (and v5e/v6e once the scoped VMEM limit is raised below).
    max_rows = ((40 << 20) // (2 * (IN_F + OUT_F) * LANE * itemsize)) // SUB * SUB
    ts = max(SUB, min(_round_up(block_rows, SUB), max_rows, s_pad))
    if s_pad > SUB:
        # Keep >=2 grid steps so dimension_semantics=("parallel",) can occupy both
        # TensorCores on v7x (no-op on single-TC v5e/v6e).
        ts = min(ts, _round_up(pl.cdiv(s_pad, 2), SUB))
    grid = (pl.cdiv(s_pad, ts),)              # non-divisible tail block is handled by
                                              # Pallas (OOB writes dropped, sliced below)

    x_p = x_fm.astype(io_dtype)
    if b_pad != batch:
        x_p = jnp.pad(x_p, ((0, 0), (0, b_pad - batch)))
    x_p = x_p.reshape(IN_F, s_pad, LANE)      # contiguous reshape: free

    smem = pl.BlockSpec(memory_space=pltpu.MemorySpace.SMEM)
    io_bytes = 2 * (IN_F + OUT_F) * ts * LANE * itemsize   # double-buffered in + out
    vmem_limit = min(io_bytes + (8 << 20), 56 << 20)       # > v5e 16 MiB default, < v7x 64 MiB

    out = pl.pallas_call(
        irisnet_kernel,
        out_shape=jax.ShapeDtypeStruct((OUT_F, s_pad, LANE), io_dtype),
        grid=grid,
        in_specs=[
            smem,                                              # w1 (scalars)
            smem,                                              # b1
            smem,                                              # w2
            smem,                                              # b2
            pl.BlockSpec((IN_F, ts, LANE), lambda i: (0, i, 0)),   # x tile
        ],
        out_specs=pl.BlockSpec((OUT_F, ts, LANE), lambda i: (0, i, 0)),
        compiler_params=pltpu.CompilerParams(
            dimension_semantics=("parallel",),
            vmem_limit_bytes=vmem_limit,
        ),
    )(w1, b1, w2, b2, x_p)

    return out.reshape(OUT_F, b_pad)[:, :batch]


def irisnet_forward(x, w1, b1, w2, b2, *, io_dtype=jnp.float32, block_rows=2048):
    """PyTorch-layout convenience wrapper: x (B, 4) sample-major -> (B, 3) logits.

    The (B,4)->(4,B) relayout is a single fused transpose(+pad) pass (no zeros+scatter).
    For best end-to-end bandwidth use irisnet_forward_fm and keep activations
    feature-major around this op.
    """
    y_fm = irisnet_forward_fm(x.T, w1, b1, w2, b2,
                              io_dtype=io_dtype, block_rows=block_rows)
    return y_fm.T


def init_params(key):
    """Deterministic init mirroring torch.nn.Linear's U(-1/sqrt(fan_in), ...).
    Weights kept in PyTorch (out_features, in_features) layout."""
    k1, k2, k3, k4 = jax.random.split(key, 4)
    bound1 = 1.0 / jnp.sqrt(4.0)
    bound2 = 1.0 / jnp.sqrt(7.0)
    w1 = jax.random.uniform(k1, (HID_F, IN_F), jnp.float32, -bound1, bound1)
    b1 = jax.random.uniform(k2, (HID_F,), jnp.float32, -bound1, bound1)
    w2 = jax.random.uniform(k3, (OUT_F, HID_F), jnp.float32, -bound2, bound2)
    b2 = jax.random.uniform(k4, (OUT_F,), jnp.float32, -bound2, bound2)
    return w1, b1, w2, b2


if __name__ == "__main__":
    key = jax.random.PRNGKey(0)
    kp, kx1, kx2, kx3 = jax.random.split(key, 4)
    w1, b1, w2, b2 = init_params(kp)

    def ref_forward(xv):
        # Same math as the PyTorch forward pass.
        return jax.nn.sigmoid(xv @ w1.T + b1) @ w2.T + b2

    # Tolerance is loosened vs. exact f32 because sigmoid uses the EUP approx
    # reciprocal (pl.reciprocal(..., approx=True)).
    TOL = 1e-2

    # 1) Small iris-like batch (single grid step).
    x_small = jax.random.normal(kx1, (32, IN_F), jnp.float32)
    y = jax.block_until_ready(irisnet_forward(x_small, w1, b1, w2, b2))
    assert y.shape == (32, OUT_F)
    assert jnp.allclose(y, ref_forward(x_small), atol=TOL, rtol=TOL), "mismatch (B=32)"

    # 2) Multi-block grid + partial tail block + non-multiple-of-128 batch.
    x_big = jax.random.normal(kx2, (3000, IN_F), jnp.float32)
    y2 = jax.block_until_ready(irisnet_forward(x_big, w1, b1, w2, b2, block_rows=16))
    assert y2.shape == (3000, OUT_F)
    assert jnp.allclose(y2, ref_forward(x_big), atol=TOL, rtol=TOL), "mismatch (B=3000)"

    # 3) Feature-major fast path (zero wrapper relayout when B % 1024 == 0).
    x_fm = jax.random.normal(kx3, (IN_F, 1024), jnp.float32)
    y3 = jax.block_until_ready(irisnet_forward_fm(x_fm, w1, b1, w2, b2))
    assert y3.shape == (OUT_F, 1024)
    assert jnp.allclose(y3.T, ref_forward(x_fm.T), atol=TOL, rtol=TOL), "mismatch (fm)"

    # 4) bf16 I/O path (halves HBM bytes/sample); compare against the reference on the
    #    bf16-quantized input with a correspondingly looser tolerance.
    xq = x_small.astype(jnp.bfloat16).astype(jnp.float32)
    y4 = jax.block_until_ready(
        irisnet_forward(x_small, w1, b1, w2, b2, io_dtype=jnp.bfloat16))
    assert jnp.allclose(y4.astype(jnp.float32), ref_forward(xq),
                        atol=5e-2, rtol=5e-2), "mismatch (bf16 I/O)"

    print("KERNEL_OK")
</pallas_src>

<mosaic_0001>
module attributes {stable_mosaic.version = 11 : i64} {
  func.func @irisnet_kernel(%arg0: i32, %arg1: memref<7x4xf32, #tpu.memory_space<smem>>, %arg2: memref<7xf32, #tpu.memory_space<smem>>, %arg3: memref<3x7xf32, #tpu.memory_space<smem>>, %arg4: memref<3xf32, #tpu.memory_space<smem>>, %arg5: memref<4x8x128xf32, #tpu.memory_space<vmem>>, %arg6: memref<3x8x128xf32, #tpu.memory_space<vmem>>) attributes {dimension_semantics = [#tpu.dimension_semantics<parallel>], iteration_bounds = array<i64: 1>, scalar_prefetch = 0 : i64, scratch_operands = 0 : i64, tpu.core_type = #tpu.core_type<tc>, window_params = [{transform_indices = @transform_0, window_bounds = array<i64: 7, 4>}, {transform_indices = @transform_1, window_bounds = array<i64: 7>}, {transform_indices = @transform_2, window_bounds = array<i64: 3, 7>}, {transform_indices = @transform_3, window_bounds = array<i64: 3>}, {transform_indices = @transform_4, window_bounds = array<i64: 4, 8, 128>}, {transform_indices = @transform_5, window_bounds = array<i64: 3, 8, 128>}]} {
    %c0 = arith.constant 0 : index
    %c0_0 = arith.constant 0 : index
    %0 = memref.load %arg1[%c0, %c0_0] : memref<7x4xf32, #tpu.memory_space<smem>>
    %c0_1 = arith.constant 0 : index
    %c1 = arith.constant 1 : index
    %1 = memref.load %arg1[%c0_1, %c1] : memref<7x4xf32, #tpu.memory_space<smem>>
    %c0_2 = arith.constant 0 : index
    %c2 = arith.constant 2 : index
    %2 = memref.load %arg1[%c0_2, %c2] : memref<7x4xf32, #tpu.memory_space<smem>>
    %c0_3 = arith.constant 0 : index
    %c3 = arith.constant 3 : index
    %3 = memref.load %arg1[%c0_3, %c3] : memref<7x4xf32, #tpu.memory_space<smem>>
    %c1_4 = arith.constant 1 : index
    %c0_5 = arith.constant 0 : index
    %4 = memref.load %arg1[%c1_4, %c0_5] : memref<7x4xf32, #tpu.memory_space<smem>>
    %c1_6 = arith.constant 1 : index
    %c1_7 = arith.constant 1 : index
    %5 = memref.load %arg1[%c1_6, %c1_7] : memref<7x4xf32, #tpu.memory_space<smem>>
    %c1_8 = arith.constant 1 : index
    %c2_9 = arith.constant 2 : index
    %6 = memref.load %arg1[%c1_8, %c2_9] : memref<7x4xf32, #tpu.memory_space<smem>>
    %c1_10 = arith.constant 1 : index
    %c3_11 = arith.constant 3 : index
    %7 = memref.load %arg1[%c1_10, %c3_11] : memref<7x4xf32, #tpu.memory_space<smem>>
    %c2_12 = arith.constant 2 : index
    %c0_13 = arith.constant 0 : index
    %8 = memref.load %arg1[%c2_12, %c0_13] : memref<7x4xf32, #tpu.memory_space<smem>>
    %c2_14 = arith.constant 2 : index
    %c1_15 = arith.constant 1 : index
    %9 = memref.load %arg1[%c2_14, %c1_15] : memref<7x4xf32, #tpu.memory_space<smem>>
    %c2_16 = arith.constant 2 : index
    %c2_17 = arith.constant 2 : index
    %10 = memref.load %arg1[%c2_16, %c2_17] : memref<7x4xf32, #tpu.memory_space<smem>>
    %c2_18 = arith.constant 2 : index
    %c3_19 = arith.constant 3 : index
    %11 = memref.load %arg1[%c2_18, %c3_19] : memref<7x4xf32, #tpu.memory_space<smem>>
    %c3_20 = arith.constant 3 : index
    %c0_21 = arith.constant 0 : index
    %12 = memref.load %arg1[%c3_20, %c0_21] : memref<7x4xf32, #tpu.memory_space<smem>>
    %c3_22 = arith.constant 3 : index
    %c1_23 = arith.constant 1 : index
    %13 = memref.load %arg1[%c3_22, %c1_23] : memref<7x4xf32, #tpu.memory_space<smem>>
    %c3_24 = arith.constant 3 : index
    %c2_25 = arith.constant 2 : index
    %14 = memref.load %arg1[%c3_24, %c2_25] : memref<7x4xf32, #tpu.memory_space<smem>>
    %c3_26 = arith.constant 3 : index
    %c3_27 = arith.constant 3 : index
    %15 = memref.load %arg1[%c3_26, %c3_27] : memref<7x4xf32, #tpu.memory_space<smem>>
    %c4 = arith.constant 4 : index
    %c0_28 = arith.constant 0 : index
    %16 = memref.load %arg1[%c4, %c0_28] : memref<7x4xf32, #tpu.memory_space<smem>>
    %c4_29 = arith.constant 4 : index
    %c1_30 = arith.constant 1 : index
    %17 = memref.load %arg1[%c4_29, %c1_30] : memref<7x4xf32, #tpu.memory_space<smem>>
    %c4_31 = arith.constant 4 : index
    %c2_32 = arith.constant 2 : index
    %18 = memref.load %arg1[%c4_31, %c2_32] : memref<7x4xf32, #tpu.memory_space<smem>>
    %c4_33 = arith.constant 4 : index
    %c3_34 = arith.constant 3 : index
    %19 = memref.load %arg1[%c4_33, %c3_34] : memref<7x4xf32, #tpu.memory_space<smem>>
    %c5 = arith.constant 5 : index
    %c0_35 = arith.constant 0 : index
    %20 = memref.load %arg1[%c5, %c0_35] : memref<7x4xf32, #tpu.memory_space<smem>>
    %c5_36 = arith.constant 5 : index
    %c1_37 = arith.constant 1 : index
    %21 = memref.load %arg1[%c5_36, %c1_37] : memref<7x4xf32, #tpu.memory_space<smem>>
    %c5_38 = arith.constant 5 : index
    %c2_39 = arith.constant 2 : index
    %22 = memref.load %arg1[%c5_38, %c2_39] : memref<7x4xf32, #tpu.memory_space<smem>>
    %c5_40 = arith.constant 5 : index
    %c3_41 = arith.constant 3 : index
    %23 = memref.load %arg1[%c5_40, %c3_41] : memref<7x4xf32, #tpu.memory_space<smem>>
    %c6 = arith.constant 6 : index
    %c0_42 = arith.constant 0 : index
    %24 = memref.load %arg1[%c6, %c0_42] : memref<7x4xf32, #tpu.memory_space<smem>>
    %c6_43 = arith.constant 6 : index
    %c1_44 = arith.constant 1 : index
    %25 = memref.load %arg1[%c6_43, %c1_44] : memref<7x4xf32, #tpu.memory_space<smem>>
    %c6_45 = arith.constant 6 : index
    %c2_46 = arith.constant 2 : index
    %26 = memref.load %arg1[%c6_45, %c2_46] : memref<7x4xf32, #tpu.memory_space<smem>>
    %c6_47 = arith.constant 6 : index
    %c3_48 = arith.constant 3 : index
    %27 = memref.load %arg1[%c6_47, %c3_48] : memref<7x4xf32, #tpu.memory_space<smem>>
    %c0_49 = arith.constant 0 : index
    %28 = memref.load %arg2[%c0_49] : memref<7xf32, #tpu.memory_space<smem>>
    %c1_50 = arith.constant 1 : index
    %29 = memref.load %arg2[%c1_50] : memref<7xf32, #tpu.memory_space<smem>>
    %c2_51 = arith.constant 2 : index
    %30 = memref.load %arg2[%c2_51] : memref<7xf32, #tpu.memory_space<smem>>
    %c3_52 = arith.constant 3 : index
    %31 = memref.load %arg2[%c3_52] : memref<7xf32, #tpu.memory_space<smem>>
    %c4_53 = arith.constant 4 : index
    %32 = memref.load %arg2[%c4_53] : memref<7xf32, #tpu.memory_space<smem>>
    %c5_54 = arith.constant 5 : index
    %33 = memref.load %arg2[%c5_54] : memref<7xf32, #tpu.memory_space<smem>>
    %c6_55 = arith.constant 6 : index
    %34 = memref.load %arg2[%c6_55] : memref<7xf32, #tpu.memory_space<smem>>
    %c0_56 = arith.constant 0 : index
    %c0_57 = arith.constant 0 : index
    %35 = memref.load %arg3[%c0_56, %c0_57] : memref<3x7xf32, #tpu.memory_space<smem>>
    %c0_58 = arith.constant 0 : index
    %c1_59 = arith.constant 1 : index
    %36 = memref.load %arg3[%c0_58, %c1_59] : memref<3x7xf32, #tpu.memory_space<smem>>
    %c0_60 = arith.constant 0 : index
    %c2_61 = arith.constant 2 : index
    %37 = memref.load %arg3[%c0_60, %c2_61] : memref<3x7xf32, #tpu.memory_space<smem>>
    %c0_62 = arith.constant 0 : index
    %c3_63 = arith.constant 3 : index
    %38 = memref.load %arg3[%c0_62, %c3_63] : memref<3x7xf32, #tpu.memory_space<smem>>
    %c0_64 = arith.constant 0 : index
    %c4_65 = arith.constant 4 : index
    %39 = memref.load %arg3[%c0_64, %c4_65] : memref<3x7xf32, #tpu.memory_space<smem>>
    %c0_66 = arith.constant 0 : index
    %c5_67 = arith.constant 5 : index
    %40 = memref.load %arg3[%c0_66, %c5_67] : memref<3x7xf32, #tpu.memory_space<smem>>
    %c0_68 = arith.constant 0 : index
    %c6_69 = arith.constant 6 : index
    %41 = memref.load %arg3[%c0_68, %c6_69] : memref<3x7xf32, #tpu.memory_space<smem>>
    %c1_70 = arith.constant 1 : index
    %c0_71 = arith.constant 0 : index
    %42 = memref.load %arg3[%c1_70, %c0_71] : memref<3x7xf32, #tpu.memory_space<smem>>
    %c1_72 = arith.constant 1 : index
    %c1_73 = arith.constant 1 : index
    %43 = memref.load %arg3[%c1_72, %c1_73] : memref<3x7xf32, #tpu.memory_space<smem>>
    %c1_74 = arith.constant 1 : index
    %c2_75 = arith.constant 2 : index
    %44 = memref.load %arg3[%c1_74, %c2_75] : memref<3x7xf32, #tpu.memory_space<smem>>
    %c1_76 = arith.constant 1 : index
    %c3_77 = arith.constant 3 : index
    %45 = memref.load %arg3[%c1_76, %c3_77] : memref<3x7xf32, #tpu.memory_space<smem>>
    %c1_78 = arith.constant 1 : index
    %c4_79 = arith.constant 4 : index
    %46 = memref.load %arg3[%c1_78, %c4_79] : memref<3x7xf32, #tpu.memory_space<smem>>
    %c1_80 = arith.constant 1 : index
    %c5_81 = arith.constant 5 : index
    %47 = memref.load %arg3[%c1_80, %c5_81] : memref<3x7xf32, #tpu.memory_space<smem>>
    %c1_82 = arith.constant 1 : index
    %c6_83 = arith.constant 6 : index
    %48 = memref.load %arg3[%c1_82, %c6_83] : memref<3x7xf32, #tpu.memory_space<smem>>
    %c2_84 = arith.constant 2 : index
    %c0_85 = arith.constant 0 : index
    %49 = memref.load %arg3[%c2_84, %c0_85] : memref<3x7xf32, #tpu.memory_space<smem>>
    %c2_86 = arith.constant 2 : index
    %c1_87 = arith.constant 1 : index
    %50 = memref.load %arg3[%c2_86, %c1_87] : memref<3x7xf32, #tpu.memory_space<smem>>
    %c2_88 = arith.constant 2 : index
    %c2_89 = arith.constant 2 : index
    %51 = memref.load %arg3[%c2_88, %c2_89] : memref<3x7xf32, #tpu.memory_space<smem>>
    %c2_90 = arith.constant 2 : index
    %c3_91 = arith.constant 3 : index
    %52 = memref.load %arg3[%c2_90, %c3_91] : memref<3x7xf32, #tpu.memory_space<smem>>
    %c2_92 = arith.constant 2 : index
    %c4_93 = arith.constant 4 : index
    %53 = memref.load %arg3[%c2_92, %c4_93] : memref<3x7xf32, #tpu.memory_space<smem>>
    %c2_94 = arith.constant 2 : index
    %c5_95 = arith.constant 5 : index
    %54 = memref.load %arg3[%c2_94, %c5_95] : memref<3x7xf32, #tpu.memory_space<smem>>
    %c2_96 = arith.constant 2 : index
    %c6_97 = arith.constant 6 : index
    %55 = memref.load %arg3[%c2_96, %c6_97] : memref<3x7xf32, #tpu.memory_space<smem>>
    %c0_98 = arith.constant 0 : index
    %56 = memref.load %arg4[%c0_98] : memref<3xf32, #tpu.memory_space<smem>>
    %c1_99 = arith.constant 1 : index
    %57 = memref.load %arg4[%c1_99] : memref<3xf32, #tpu.memory_space<smem>>
    %c2_100 = arith.constant 2 : index
    %58 = memref.load %arg4[%c2_100] : memref<3xf32, #tpu.memory_space<smem>>
    %c0_i32 = arith.constant 0 : i32
    %c1_i32 = arith.constant 1 : i32
    %59 = arith.muli %c0_i32, %c1_i32 : i32
    %c0_i32_101 = arith.constant 0 : i32
    %60 = arith.addi %c0_i32_101, %59 : i32
    %c8_i32 = arith.constant 8 : i32
    %61 = arith.muli %60, %c8_i32 : i32
    %62 = tpu.assume_multiple %61, 8 : i32
    %c0_102 = arith.constant 0 : index
    %63 = arith.index_cast %62 : i32 to index
    %c0_103 = arith.constant 0 : index
    %64 = vector.load %arg5[%c0_102, %63, %c0_103] : memref<4x8x128xf32, #tpu.memory_space<vmem>>, vector<1x8x128xf32>
    %65 = vector.shape_cast %64 : vector<1x8x128xf32> to vector<8x128xf32>
    %c1_104 = arith.constant 1 : index
    %66 = arith.index_cast %62 : i32 to index
    %c0_105 = arith.constant 0 : index
    %67 = vector.load %arg5[%c1_104, %66, %c0_105] : memref<4x8x128xf32, #tpu.memory_space<vmem>>, vector<1x8x128xf32>
    %68 = vector.shape_cast %67 : vector<1x8x128xf32> to vector<8x128xf32>
    %c2_106 = arith.constant 2 : index
    %69 = arith.index_cast %62 : i32 to index
    %c0_107 = arith.constant 0 : index
    %70 = vector.load %arg5[%c2_106, %69, %c0_107] : memref<4x8x128xf32, #tpu.memory_space<vmem>>, vector<1x8x128xf32>
    %71 = vector.shape_cast %70 : vector<1x8x128xf32> to vector<8x128xf32>
    %c3_108 = arith.constant 3 : index
    %72 = arith.index_cast %62 : i32 to index
    %c0_109 = arith.constant 0 : index
    %73 = vector.load %arg5[%c3_108, %72, %c0_109] : memref<4x8x128xf32, #tpu.memory_space<vmem>>, vector<1x8x128xf32>
    %74 = vector.shape_cast %73 : vector<1x8x128xf32> to vector<8x128xf32>
    %75 = vector.broadcast %56 : f32 to vector<8x128xf32>
    %76 = vector.broadcast %57 : f32 to vector<8x128xf32>
    %77 = vector.broadcast %58 : f32 to vector<8x128xf32>
    %78 = vector.broadcast %0 : f32 to vector<8x128xf32>
    %79 = arith.mulf %65, %78 : vector<8x128xf32>
    %80 = vector.broadcast %1 : f32 to vector<8x128xf32>
    %81 = arith.mulf %68, %80 : vector<8x128xf32>
    %82 = arith.addf %79, %81 : vector<8x128xf32>
    %83 = vector.broadcast %2 : f32 to vector<8x128xf32>
    %84 = arith.mulf %71, %83 : vector<8x128xf32>
    %85 = arith.addf %82, %84 : vector<8x128xf32>
    %86 = vector.broadcast %3 : f32 to vector<8x128xf32>
    %87 = arith.mulf %74, %86 : vector<8x128xf32>
    %88 = arith.addf %85, %87 : vector<8x128xf32>
    %89 = vector.broadcast %28 : f32 to vector<8x128xf32>
    %90 = arith.addf %88, %89 : vector<8x128xf32>
    %cst = arith.constant 0.000000e+00 : f32
    %91 = vector.broadcast %cst : f32 to vector<8x128xf32>
    %92 = arith.subf %91, %90 : vector<8x128xf32>
    %93 = math.exp %92 : vector<8x128xf32>
    %cst_110 = arith.constant 1.000000e+00 : f32
    %94 = vector.broadcast %cst_110 : f32 to vector<8x128xf32>
    %95 = arith.addf %94, %93 : vector<8x128xf32>
    %96 = tpu.reciprocal %95 {approx = true} : vector<8x128xf32> -> vector<8x128xf32>
    %97 = vector.broadcast %35 : f32 to vector<8x128xf32>
    %98 = arith.mulf %96, %97 : vector<8x128xf32>
    %99 = arith.addf %75, %98 : vector<8x128xf32>
    %100 = vector.broadcast %42 : f32 to vector<8x128xf32>
    %101 = arith.mulf %96, %100 : vector<8x128xf32>
    %102 = arith.addf %76, %101 : vector<8x128xf32>
    %103 = vector.broadcast %49 : f32 to vector<8x128xf32>
    %104 = arith.mulf %96, %103 : vector<8x128xf32>
    %105 = arith.addf %77, %104 : vector<8x128xf32>
    %106 = vector.broadcast %4 : f32 to vector<8x128xf32>
    %107 = arith.mulf %65, %106 : vector<8x128xf32>
    %108 = vector.broadcast %5 : f32 to vector<8x128xf32>
    %109 = arith.mulf %68, %108 : vector<8x128xf32>
    %110 = arith.addf %107, %109 : vector<8x128xf32>
    %111 = vector.broadcast %6 : f32 to vector<8x128xf32>
    %112 = arith.mulf %71, %111 : vector<8x128xf32>
    %113 = arith.addf %110, %112 : vector<8x128xf32>
    %114 = vector.broadcast %7 : f32 to vector<8x128xf32>
    %115 = arith.mulf %74, %114 : vector<8x128xf32>
    %116 = arith.addf %113, %115 : vector<8x128xf32>
    %117 = vector.broadcast %29 : f32 to vector<8x128xf32>
    %118 = arith.addf %116, %117 : vector<8x128xf32>
    %cst_111 = arith.constant 0.000000e+00 : f32
    %119 = vector.broadcast %cst_111 : f32 to vector<8x128xf32>
    %120 = arith.subf %119, %118 : vector<8x128xf32>
    %121 = math.exp %120 : vector<8x128xf32>
    %cst_112 = arith.constant 1.000000e+00 : f32
    %122 = vector.broadcast %cst_112 : f32 to vector<8x128xf32>
    %123 = arith.addf %122, %121 : vector<8x128xf32>
    %124 = tpu.reciprocal %123 {approx = true} : vector<8x128xf32> -> vector<8x128xf32>
    %125 = vector.broadcast %36 : f32 to vector<8x128xf32>
    %126 = arith.mulf %124, %125 : vector<8x128xf32>
    %127 = arith.addf %99, %126 : vector<8x128xf32>
    %128 = vector.broadcast %43 : f32 to vector<8x128xf32>
    %129 = arith.mulf %124, %128 : vector<8x128xf32>
    %130 = arith.addf %102, %129 : vector<8x128xf32>
    %131 = vector.broadcast %50 : f32 to vector<8x128xf32>
    %132 = arith.mulf %124, %131 : vector<8x128xf32>
    %133 = arith.addf %105, %132 : vector<8x128xf32>
    %134 = vector.broadcast %8 : f32 to vector<8x128xf32>
    %135 = arith.mulf %65, %134 : vector<8x128xf32>
    %136 = vector.broadcast %9 : f32 to vector<8x128xf32>
    %137 = arith.mulf %68, %136 : vector<8x128xf32>
    %138 = arith.addf %135, %137 : vector<8x128xf32>
    %139 = vector.broadcast %10 : f32 to vector<8x128xf32>
    %140 = arith.mulf %71, %139 : vector<8x128xf32>
    %141 = arith.addf %138, %140 : vector<8x128xf32>
    %142 = vector.broadcast %11 : f32 to vector<8x128xf32>
    %143 = arith.mulf %74, %142 : vector<8x128xf32>
    %144 = arith.addf %141, %143 : vector<8x128xf32>
    %145 = vector.broadcast %30 : f32 to vector<8x128xf32>
    %146 = arith.addf %144, %145 : vector<8x128xf32>
    %cst_113 = arith.constant 0.000000e+00 : f32
    %147 = vector.broadcast %cst_113 : f32 to vector<8x128xf32>
    %148 = arith.subf %147, %146 : vector<8x128xf32>
    %149 = math.exp %148 : vector<8x128xf32>
    %cst_114 = arith.constant 1.000000e+00 : f32
    %150 = vector.broadcast %cst_114 : f32 to vector<8x128xf32>
    %151 = arith.addf %150, %149 : vector<8x128xf32>
    %152 = tpu.reciprocal %151 {approx = true} : vector<8x128xf32> -> vector<8x128xf32>
    %153 = vector.broadcast %37 : f32 to vector<8x128xf32>
    %154 = arith.mulf %152, %153 : vector<8x128xf32>
    %155 = arith.addf %127, %154 : vector<8x128xf32>
    %156 = vector.broadcast %44 : f32 to vector<8x128xf32>
    %157 = arith.mulf %152, %156 : vector<8x128xf32>
    %158 = arith.addf %130, %157 : vector<8x128xf32>
    %159 = vector.broadcast %51 : f32 to vector<8x128xf32>
    %160 = arith.mulf %152, %159 : vector<8x128xf32>
    %161 = arith.addf %133, %160 : vector<8x128xf32>
    %162 = vector.broadcast %12 : f32 to vector<8x128xf32>
    %163 = arith.mulf %65, %162 : vector<8x128xf32>
    %164 = vector.broadcast %13 : f32 to vector<8x128xf32>
    %165 = arith.mulf %68, %164 : vector<8x128xf32>
    %166 = arith.addf %163, %165 : vector<8x128xf32>
    %167 = vector.broadcast %14 : f32 to vector<8x128xf32>
    %168 = arith.mulf %71, %167 : vector<8x128xf32>
    %169 = arith.addf %166, %168 : vector<8x128xf32>
    %170 = vector.broadcast %15 : f32 to vector<8x128xf32>
    %171 = arith.mulf %74, %170 : vector<8x128xf32>
    %172 = arith.addf %169, %171 : vector<8x128xf32>
    %173 = vector.broadcast %31 : f32 to vector<8x128xf32>
    %174 = arith.addf %172, %173 : vector<8x128xf32>
    %cst_115 = arith.constant 0.000000e+00 : f32
    %175 = vector.broadcast %cst_115 : f32 to vector<8x128xf32>
    %176 = arith.subf %175, %174 : vector<8x128xf32>
    %177 = math.exp %176 : vector<8x128xf32>
    %cst_116 = arith.constant 1.000000e+00 : f32
    %178 = vector.broadcast %cst_116 : f32 to vector<8x128xf32>
    %179 = arith.addf %178, %177 : vector<8x128xf32>
    %180 = tpu.reciprocal %179 {approx = true} : vector<8x128xf32> -> vector<8x128xf32>
    %181 = vector.broadcast %38 : f32 to vector<8x128xf32>
    %182 = arith.mulf %180, %181 : vector<8x128xf32>
    %183 = arith.addf %155, %182 : vector<8x128xf32>
    %184 = vector.broadcast %45 : f32 to vector<8x128xf32>
    %185 = arith.mulf %180, %184 : vector<8x128xf32>
    %186 = arith.addf %158, %185 : vector<8x128xf32>
    %187 = vector.broadcast %52 : f32 to vector<8x128xf32>
    %188 = arith.mulf %180, %187 : vector<8x128xf32>
    %189 = arith.addf %161, %188 : vector<8x128xf32>
    %190 = vector.broadcast %16 : f32 to vector<8x128xf32>
    %191 = arith.mulf %65, %190 : vector<8x128xf32>
    %192 = vector.broadcast %17 : f32 to vector<8x128xf32>
    %193 = arith.mulf %68, %192 : vector<8x128xf32>
    %194 = arith.addf %191, %193 : vector<8x128xf32>
    %195 = vector.broadcast %18 : f32 to vector<8x128xf32>
    %196 = arith.mulf %71, %195 : vector<8x128xf32>
    %197 = arith.addf %194, %196 : vector<8x128xf32>
    %198 = vector.broadcast %19 : f32 to vector<8x128xf32>
    %199 = arith.mulf %74, %198 : vector<8x128xf32>
    %200 = arith.addf %197, %199 : vector<8x128xf32>
    %201 = vector.broadcast %32 : f32 to vector<8x128xf32>
    %202 = arith.addf %200, %201 : vector<8x128xf32>
    %cst_117 = arith.constant 0.000000e+00 : f32
    %203 = vector.broadcast %cst_117 : f32 to vector<8x128xf32>
    %204 = arith.subf %203, %202 : vector<8x128xf32>
    %205 = math.exp %204 : vector<8x128xf32>
    %cst_118 = arith.constant 1.000000e+00 : f32
    %206 = vector.broadcast %cst_118 : f32 to vector<8x128xf32>
    %207 = arith.addf %206, %205 : vector<8x128xf32>
    %208 = tpu.reciprocal %207 {approx = true} : vector<8x128xf32> -> vector<8x128xf32>
    %209 = vector.broadcast %39 : f32 to vector<8x128xf32>
    %210 = arith.mulf %208, %209 : vector<8x128xf32>
    %211 = arith.addf %183, %210 : vector<8x128xf32>
    %212 = vector.broadcast %46 : f32 to vector<8x128xf32>
    %213 = arith.mulf %208, %212 : vector<8x128xf32>
    %214 = arith.addf %186, %213 : vector<8x128xf32>
    %215 = vector.broadcast %53 : f32 to vector<8x128xf32>
    %216 = arith.mulf %208, %215 : vector<8x128xf32>
    %217 = arith.addf %189, %216 : vector<8x128xf32>
    %218 = vector.broadcast %20 : f32 to vector<8x128xf32>
    %219 = arith.mulf %65, %218 : vector<8x128xf32>
    %220 = vector.broadcast %21 : f32 to vector<8x128xf32>
    %221 = arith.mulf %68, %220 : vector<8x128xf32>
    %222 = arith.addf %219, %221 : vector<8x128xf32>
    %223 = vector.broadcast %22 : f32 to vector<8x128xf32>
    %224 = arith.mulf %71, %223 : vector<8x128xf32>
    %225 = arith.addf %222, %224 : vector<8x128xf32>
    %226 = vector.broadcast %23 : f32 to vector<8x128xf32>
    %227 = arith.mulf %74, %226 : vector<8x128xf32>
    %228 = arith.addf %225, %227 : vector<8x128xf32>
    %229 = vector.broadcast %33 : f32 to vector<8x128xf32>
    %230 = arith.addf %228, %229 : vector<8x128xf32>
    %cst_119 = arith.constant 0.000000e+00 : f32
    %231 = vector.broadcast %cst_119 : f32 to vector<8x128xf32>
    %232 = arith.subf %231, %230 : vector<8x128xf32>
    %233 = math.exp %232 : vector<8x128xf32>
    %cst_120 = arith.constant 1.000000e+00 : f32
    %234 = vector.broadcast %cst_120 : f32 to vector<8x128xf32>
    %235 = arith.addf %234, %233 : vector<8x128xf32>
    %236 = tpu.reciprocal %235 {approx = true} : vector<8x128xf32> -> vector<8x128xf32>
    %237 = vector.broadcast %40 : f32 to vector<8x128xf32>
    %238 = arith.mulf %236, %237 : vector<8x128xf32>
    %239 = arith.addf %211, %238 : vector<8x128xf32>
    %240 = vector.broadcast %47 : f32 to vector<8x128xf32>
    %241 = arith.mulf %236, %240 : vector<8x128xf32>
    %242 = arith.addf %214, %241 : vector<8x128xf32>
    %243 = vector.broadcast %54 : f32 to vector<8x128xf32>
    %244 = arith.mulf %236, %243 : vector<8x128xf32>
    %245 = arith.addf %217, %244 : vector<8x128xf32>
    %246 = vector.broadcast %24 : f32 to vector<8x128xf32>
    %247 = arith.mulf %65, %246 : vector<8x128xf32>
    %248 = vector.broadcast %25 : f32 to vector<8x128xf32>
    %249 = arith.mulf %68, %248 : vector<8x128xf32>
    %250 = arith.addf %247, %249 : vector<8x128xf32>
    %251 = vector.broadcast %26 : f32 to vector<8x128xf32>
    %252 = arith.mulf %71, %251 : vector<8x128xf32>
    %253 = arith.addf %250, %252 : vector<8x128xf32>
    %254 = vector.broadcast %27 : f32 to vector<8x128xf32>
    %255 = arith.mulf %74, %254 : vector<8x128xf32>
    %256 = arith.addf %253, %255 : vector<8x128xf32>
    %257 = vector.broadcast %34 : f32 to vector<8x128xf32>
    %258 = arith.addf %256, %257 : vector<8x128xf32>
    %cst_121 = arith.constant 0.000000e+00 : f32
    %259 = vector.broadcast %cst_121 : f32 to vector<8x128xf32>
    %260 = arith.subf %259, %258 : vector<8x128xf32>
    %261 = math.exp %260 : vector<8x128xf32>
    %cst_122 = arith.constant 1.000000e+00 : f32
    %262 = vector.broadcast %cst_122 : f32 to vector<8x128xf32>
    %263 = arith.addf %262, %261 : vector<8x128xf32>
    %264 = tpu.reciprocal %263 {approx = true} : vector<8x128xf32> -> vector<8x128xf32>
    %265 = vector.broadcast %41 : f32 to vector<8x128xf32>
    %266 = arith.mulf %264, %265 : vector<8x128xf32>
    %267 = arith.addf %239, %266 : vector<8x128xf32>
    %268 = vector.broadcast %48 : f32 to vector<8x128xf32>
    %269 = arith.mulf %264, %268 : vector<8x128xf32>
    %270 = arith.addf %242, %269 : vector<8x128xf32>
    %271 = vector.broadcast %55 : f32 to vector<8x128xf32>
    %272 = arith.mulf %264, %271 : vector<8x128xf32>
    %273 = arith.addf %245, %272 : vector<8x128xf32>
    %c0_123 = arith.constant 0 : index
    %274 = arith.index_cast %62 : i32 to index
    %c0_124 = arith.constant 0 : index
    %275 = vector.load %arg6[%c0_123, %274, %c0_124] : memref<3x8x128xf32, #tpu.memory_space<vmem>>, vector<1x8x128xf32>
    %276 = vector.shape_cast %275 : vector<1x8x128xf32> to vector<8x128xf32>
    %277 = vector.shape_cast %267 : vector<8x128xf32> to vector<1x8x128xf32>
    tpu.vector_store %arg6[%c0_123, %274, %c0_124], %277 {strides = array<i32>} : memref<3x8x128xf32, #tpu.memory_space<vmem>>, vector<1x8x128xf32>,
    %c1_125 = arith.constant 1 : index
    %278 = arith.index_cast %62 : i32 to index
    %c0_126 = arith.constant 0 : index
    %279 = vector.load %arg6[%c1_125, %278, %c0_126] : memref<3x8x128xf32, #tpu.memory_space<vmem>>, vector<1x8x128xf32>
    %280 = vector.shape_cast %279 : vector<1x8x128xf32> to vector<8x128xf32>
    %281 = vector.shape_cast %270 : vector<8x128xf32> to vector<1x8x128xf32>
    tpu.vector_store %arg6[%c1_125, %278, %c0_126], %281 {strides = array<i32>} : memref<3x8x128xf32, #tpu.memory_space<vmem>>, vector<1x8x128xf32>,
    %c2_127 = arith.constant 2 : index
    %282 = arith.index_cast %62 : i32 to index
    %c0_128 = arith.constant 0 : index
    %283 = vector.load %arg6[%c2_127, %282, %c0_128] : memref<3x8x128xf32, #tpu.memory_space<vmem>>, vector<1x8x128xf32>
    %284 = vector.shape_cast %283 : vector<1x8x128xf32> to vector<8x128xf32>
    %285 = vector.shape_cast %273 : vector<8x128xf32> to vector<1x8x128xf32>
    tpu.vector_store %arg6[%c2_127, %282, %c0_128], %285 {strides = array<i32>} : memref<3x8x128xf32, #tpu.memory_space<vmem>>, vector<1x8x128xf32>,
    %c1_i32_129 = arith.constant 1 : i32
    return
  }
  func.func @transform_0(%arg0: i32) -> (i32, i32) {
    %c0_i32 = arith.constant 0 : i32
    %c0_i32_0 = arith.constant 0 : i32
    %c0_i32_1 = arith.constant 0 : i32
    return %c0_i32, %c0_i32_0 : i32, i32
  }
  func.func @transform_1(%arg0: i32) -> i32 {
    %c0_i32 = arith.constant 0 : i32
    %c0_i32_0 = arith.constant 0 : i32
    return %c0_i32 : i32
  }
  func.func @transform_2(%arg0: i32) -> (i32, i32) {
    %c0_i32 = arith.constant 0 : i32
    %c0_i32_0 = arith.constant 0 : i32
    %c0_i32_1 = arith.constant 0 : i32
    return %c0_i32, %c0_i32_0 : i32, i32
  }
  func.func @transform_3(%arg0: i32) -> i32 {
    %c0_i32 = arith.constant 0 : i32
    %c0_i32_0 = arith.constant 0 : i32
    return %c0_i32 : i32
  }
  func.func @transform_4(%arg0: i32) -> (i32, i32, i32) {
    %c0_i32 = arith.constant 0 : i32
    %c0_i32_0 = arith.constant 0 : i32
    %c0_i32_1 = arith.constant 0 : i32
    return %c0_i32, %arg0, %c0_i32_0 : i32, i32, i32
  }
  func.func @transform_5(%arg0: i32) -> (i32, i32, i32) {
    %c0_i32 = arith.constant 0 : i32
    %c0_i32_0 = arith.constant 0 : i32
    %c0_i32_1 = arith.constant 0 : i32
    return %c0_i32, %arg0, %c0_i32_0 : i32, i32, i32
  }
}

</mosaic_0001>

<llo_original>
// kernel: tpu_custom_call.1
$region0: #{tpu_custom_call.1}
  #allocation0 [shape = 'u32[]', space=smem, size = 0x4, offset = 0x4, fixed_abs, tag = 'smem constant byte address 0x4 - core index']
  #allocation1 [shape = 'u32[144,128]{1,0:T(1,128)}', space=vmem, size = 0x12000, scoped, tag = 'internal scratch']
  %s0 = inlined_call_operand.vmem [shape: f32[7,4], index: 0, kind: input, shape index: {}]
  %s1 = inlined_call_operand.vmem [shape: f32[7], index: 1, kind: input, shape index: {}]
  %s2 = inlined_call_operand.vmem [shape: f32[3,7], index: 2, kind: input, shape index: {}]
  %s3 = inlined_call_operand.vmem [shape: f32[3], index: 3, kind: input, shape index: {}]
  %s4 = inlined_call_operand.hbm [shape: f32[4,8,128], index: 4, kind: input, shape index: {}]
  %s5 = inlined_call_operand.hbm [shape: f32[3,8,128], index: 5, kind: output, shape index: {}]
  %s6 = sld [smem:[#allocation0]]
  $region50: #{tpu_custom_call.1} parent=0
    _
  %s8 = ssub.s32 1, %s6
  %s9 = scalar_select 0, %s8, %s6
  $region1: #{tpu_custom_call.1} parent=0
    #allocation2 [shape = 'u8[4096]{0}', space=smem, size = 0x1000, scoped, tag = 'input window, operand 0, single buffered']
    #allocation3 [shape = 's32[1]{0}', space=sflag, size = 0x4, scoped, tag = 'scoped memory for tpu_custom_call.1']
    #allocation4 [shape = 's32[1]{0}', space=sflag, size = 0x4, scoped, tag = 'scoped memory for tpu_custom_call.1']
    #allocation5 [shape = 's32[1]{0}', space=sflag, size = 0x4, scoped, tag = 'scoped memory for tpu_custom_call.1']
    #allocation6 [shape = 'u8[512]{0}', space=smem, size = 0x200, scoped, tag = 'input window, operand 1, single buffered']
    #allocation7 [shape = 's32[1]{0}', space=sflag, size = 0x4, scoped, tag = 'scoped memory for tpu_custom_call.1']
    #allocation8 [shape = 'u8[2048]{0}', space=smem, size = 0x800, scoped, tag = 'input window, operand 2, single buffered']
    #allocation9 [shape = 'u8[512]{0}', space=smem, size = 0x200, scoped, tag = 'input window, operand 3, single buffered']
    #allocation10 [shape = 's32[1]{0}', space=sflag, size = 0x4, scoped, tag = 'scoped memory for tpu_custom_call.1']
    #allocation11 [shape = 'u8[16384]{0}', space=vmem, size = 0x4000, scoped, tag = 'input window, operand 4, single buffered']
    #allocation12 [shape = 'u8[12288]{0}', space=vmem, size = 0x3000, scoped, tag = 'output window, operand 0, single buffered']
    %10 = vsyncpa [#allocation5], 0
    %11 = vsyncpa [#allocation7], 0
    %12 = vsyncpa [#allocation10], 0
    %13 = vsyncpa [#allocation3], 0
    %14 = vsyncpa [#allocation4], 0
    // Predicated region
    $region2: #{tpu_custom_call.1} parent=1 // pred_check
      _
    $region3: #{tpu_custom_call.1} parent=1 // pred_check_branch
      %16 = sbr.rel (0) target = $region5
    $region4: #{tpu_custom_call.1} parent=1 // pred_region
      %s18 = ssub.s32 128, 128
      %19 = vsyncadd [#allocation5], %s18
      %s21 = sshll.u32 %s0, 4
      %s22 = int_to_ptr.vmem [resolvable:$true] %s21
      %24 = dma.vmem_to_smem %s22, 128, [#allocation2], [#allocation5]
    $region5: #{tpu_custom_call.1} parent=1 // pred_fallthru
      _
    // Predicated region
    $region6: #{tpu_custom_call.1} parent=1 // pred_check
      _
    $region7: #{tpu_custom_call.1} parent=1 // pred_check_branch
      %26 = sbr.rel (0) target = $region9
    $region8: #{tpu_custom_call.1} parent=1 // pred_region
      %s28 = ssub.s32 16, 16
      %29 = vsyncadd [#allocation7], %s28
      %s31 = sshll.u32 %s1, 4
      %s32 = int_to_ptr.vmem [resolvable:$true] %s31
      %34 = dma.vmem_to_smem %s32, 16, [#allocation6], [#allocation7]
    $region9: #{tpu_custom_call.1} parent=1 // pred_fallthru
      _
    // Predicated region
    $region10: #{tpu_custom_call.1} parent=1 // pred_check
      _
    $region11: #{tpu_custom_call.1} parent=1 // pred_check_branch
      %36 = sbr.rel (0) target = $region13
    $region12: #{tpu_custom_call.1} parent=1 // pred_region
      %s38 = ssub.s32 64, 64
      %39 = vsyncadd [#allocation7], %s38
      %s41 = sshll.u32 %s2, 4
      %s42 = int_to_ptr.vmem [resolvable:$true] %s41
      %44 = dma.vmem_to_smem %s42, 64, [#allocation8], [#allocation7]
    $region13: #{tpu_custom_call.1} parent=1 // pred_fallthru
      _
    // Predicated region
    $region14: #{tpu_custom_call.1} parent=1 // pred_check
      _
    $region15: #{tpu_custom_call.1} parent=1 // pred_check_branch
      %46 = sbr.rel (0) target = $region17
    $region16: #{tpu_custom_call.1} parent=1 // pred_region
      %s48 = ssub.s32 16, 16
      %49 = vsyncadd [#allocation10], %s48
      %s51 = sshll.u32 %s3, 4
      %s52 = int_to_ptr.vmem [resolvable:$true] %s51
      %54 = dma.vmem_to_smem %s52, 16, [#allocation9], [#allocation10]
    $region17: #{tpu_custom_call.1} parent=1 // pred_fallthru
      _
    // Predicated region
    $region18: #{tpu_custom_call.1} parent=1 // pred_check
      _
    $region19: #{tpu_custom_call.1} parent=1 // pred_check_branch
      %56 = sbr.rel (0) target = $region21
    $region20: #{tpu_custom_call.1} parent=1 // pred_region
      %s58 = ssub.s32 512, 512
      %59 = vsyncadd [#allocation3], %s58
      %s60 = sshll.u32 [#allocation11], 4
      %s61 = int_to_ptr.vmem [resolvable:$true] %s60
      %66 = dma.hbm_to_vmem [thread:$0]  %s4, 512, %s61, [#allocation3], 128, 128, 8
    $region21: #{tpu_custom_call.1} parent=1 // pred_fallthru
      _
    // Predicated region
    $region22: #{tpu_custom_call.1} parent=1 // pred_check
      _
    $region23: #{tpu_custom_call.1} parent=1 // pred_check_branch
      %68 = sbr.rel (0) target = $region25
    $region24: #{tpu_custom_call.1} parent=1 // pred_region
      %69 = dma.done [#allocation5], 128
    $region25: #{tpu_custom_call.1} parent=1 // pred_fallthru
      _
    // Predicated region
    $region26: #{tpu_custom_call.1} parent=1 // pred_check
      _
    $region27: #{tpu_custom_call.1} parent=1 // pred_check_branch
      %71 = sbr.rel (0) target = $region29
    $region28: #{tpu_custom_call.1} parent=1 // pred_region
      %72 = dma.done [#allocation7], 16
    $region29: #{tpu_custom_call.1} parent=1 // pred_fallthru
      _
    // Predicated region
    $region30: #{tpu_custom_call.1} parent=1 // pred_check
      _
    $region31: #{tpu_custom_call.1} parent=1 // pred_check_branch
      %74 = sbr.rel (0) target = $region33
    $region32: #{tpu_custom_call.1} parent=1 // pred_region
      %75 = dma.done [#allocation7], 64
    $region33: #{tpu_custom_call.1} parent=1 // pred_fallthru
      _
    // Predicated region
    $region34: #{tpu_custom_call.1} parent=1 // pred_check
      _
    $region35: #{tpu_custom_call.1} parent=1 // pred_check_branch
      %77 = sbr.rel (0) target = $region37
    $region36: #{tpu_custom_call.1} parent=1 // pred_region
      %78 = dma.done [#allocation10], 16
    $region37: #{tpu_custom_call.1} parent=1 // pred_fallthru
      _
    // Predicated region
    $region38: #{tpu_custom_call.1} parent=1 // pred_check
      _
    $region39: #{tpu_custom_call.1} parent=1 // pred_check_branch
      %80 = sbr.rel (0) target = $region41
    $region40: #{tpu_custom_call.1} parent=1 // pred_region
      %81 = dma.done [#allocation3], 512
    $region41: #{tpu_custom_call.1} parent=1 // pred_fallthru
      _
    %82 = sfence
    %s83 = sld [smem:[#allocation2]]
    %s84 = sld [smem:[#allocation2 + $0x1]]
    %s85 = sld [smem:[#allocation2 + $0x2]]
    %s86 = sld [smem:[#allocation2 + $0x3]]
    %s87 = sld [smem:[#allocation2 + $0x80]]
    %s88 = sld [smem:[#allocation2 + $0x81]]
    %s89 = sld [smem:[#allocation2 + $0x82]]
    %s90 = sld [smem:[#allocation2 + $0x83]]
    %s91 = sld [smem:[#allocation2 + $0x100]]
    %s92 = sld [smem:[#allocation2 + $0x101]]
    %s93 = sld [smem:[#allocation2 + $0x102]]
    %s94 = sld [smem:[#allocation2 + $0x103]]
    %s95 = sld [smem:[#allocation2 + $0x180]]
    %s96 = sld [smem:[#allocation2 + $0x181]]
    %s97 = sld [smem:[#allocation2 + $0x182]]
    %s98 = sld [smem:[#allocation2 + $0x183]]
    %s99 = sld [smem:[#allocation2 + $0x200]]
    %s100 = sld [smem:[#allocation2 + $0x201]]
    %s101 = sld [smem:[#allocation2 + $0x202]]
    %s102 = sld [smem:[#allocation2 + $0x203]]
    %s103 = sld [smem:[#allocation2 + $0x280]]
    %s104 = sld [smem:[#allocation2 + $0x281]]
    %s105 = sld [smem:[#allocation2 + $0x282]]
    %s106 = sld [smem:[#allocation2 + $0x283]]
    %s107 = sld [smem:[#allocation2 + $0x300]]
    %s108 = sld [smem:[#allocation2 + $0x301]]
    %s109 = sld [smem:[#allocation2 + $0x302]]
    %s110 = sld [smem:[#allocation2 + $0x303]]
    %s111 = sld [smem:[#allocation6]]
    %s112 = sld [smem:[#allocation6 + $0x1]]
    %s113 = sld [smem:[#allocation6 + $0x2]]
    %s114 = sld [smem:[#allocation6 + $0x3]]
    %s115 = sld [smem:[#allocation6 + $0x4]]
    %s116 = sld [smem:[#allocation6 + $0x5]]
    %s117 = sld [smem:[#allocation6 + $0x6]]
    %s118 = sld [smem:[#allocation8]]
    %s119 = sld [smem:[#allocation8 + $0x1]]
    %s120 = sld [smem:[#allocation8 + $0x2]]
    %s121 = sld [smem:[#allocation8 + $0x3]]
    %s122 = sld [smem:[#allocation8 + $0x4]]
    %s123 = sld [smem:[#allocation8 + $0x5]]
    %s124 = sld [smem:[#allocation8 + $0x6]]
    %s125 = sld [smem:[#allocation8 + $0x80]]
    %s126 = sld [smem:[#allocation8 + $0x81]]
    %s127 = sld [smem:[#allocation8 + $0x82]]
    %s128 = sld [smem:[#allocation8 + $0x83]]
    %s129 = sld [smem:[#allocation8 + $0x84]]
    %s130 = sld [smem:[#allocation8 + $0x85]]
    %s131 = sld [smem:[#allocation8 + $0x86]]
    %s132 = sld [smem:[#allocation8 + $0x100]]
    %s133 = sld [smem:[#allocation8 + $0x101]]
    %s134 = sld [smem:[#allocation8 + $0x102]]
    %s135 = sld [smem:[#allocation8 + $0x103]]
    %s136 = sld [smem:[#allocation8 + $0x104]]
    %s137 = sld [smem:[#allocation8 + $0x105]]
    %s138 = sld [smem:[#allocation8 + $0x106]]
    %s139 = sld [smem:[#allocation9]]
    %s140 = sld [smem:[#allocation9 + $0x1]]
    %s141 = sld [smem:[#allocation9 + $0x2]]
    %v142 = vld [vmem:[#allocation11] sm:$0xff]
    %s143 = sadd.s32 0, 8
    %s144 = scalar_lea.vmem [#allocation11], %s143
    %v145 = vld [vmem:[%s144] sm:$0xff]
    %s146 = sadd.s32 0, 16
    %s147 = scalar_lea.vmem [#allocation11], %s146
    %v148 = vld [vmem:[%s147] sm:$0xff]
    %s149 = sadd.s32 0, 24
    %s150 = scalar_lea.vmem [#allocation11], %s149
    %v151 = vld [vmem:[%s150] sm:$0xff]
    %v152 = vstv %s139
    %v153 = vstv %s140
    %v154 = vstv %s141
    %v155 = vstv %s83
    %v156 = vmul.f32 %v142, %v155
    %v157 = vstv %s84
    %v158 = vmul.f32 %v145, %v157
    %v159 = vadd.f32 %v156, %v158
    %v160 = vstv %s85
    %v161 = vmul.f32 %v148, %v160
    %v162 = vadd.f32 %v159, %v161
    %v163 = vstv %s86
    %v164 = vmul.f32 %v151, %v163
    %v165 = vadd.f32 %v162, %v164
    %v166 = vstv %s111
    %v167 = vadd.f32 %v165, %v166
    %v168 = vsub.f32 0.0, %v167
    %v169 = vmul.f32 %v168, 1.442695
    %v170 = vpow.pop %v169
    %v171 = vadd.f32 %v170, 1.0
    %v172 = vrcp.pop %v171
    %v173 = vstv %s118
    %v174 = vmul.f32 %v172, %v173
    %v175 = vadd.f32 %v152, %v174
    %v176 = vstv %s125
    %v177 = vmul.f32 %v172, %v176
    %v178 = vadd.f32 %v153, %v177
    %v179 = vstv %s132
    %v180 = vmul.f32 %v172, %v179
    %v181 = vadd.f32 %v154, %v180
    %v182 = vstv %s87
    %v183 = vmul.f32 %v142, %v182
    %v184 = vstv %s88
    %v185 = vmul.f32 %v145, %v184
    %v186 = vadd.f32 %v183, %v185
    %v187 = vstv %s89
    %v188 = vmul.f32 %v148, %v187
    %v189 = vadd.f32 %v186, %v188
    %v190 = vstv %s90
    %v191 = vmul.f32 %v151, %v190
    %v192 = vadd.f32 %v189, %v191
    %v193 = vstv %s112
    %v194 = vadd.f32 %v192, %v193
    %v195 = vsub.f32 0.0, %v194
    %v196 = vmul.f32 %v195, 1.442695
    %v197 = vpow.pop %v196
    %v198 = vadd.f32 %v197, 1.0
    %v199 = vrcp.pop %v198
    %v200 = vstv %s119
    %v201 = vmul.f32 %v199, %v200
    %v202 = vadd.f32 %v175, %v201
    %v203 = vstv %s126
    %v204 = vmul.f32 %v199, %v203
    %v205 = vadd.f32 %v178, %v204
    %v206 = vstv %s133
    %v207 = vmul.f32 %v199, %v206
    %v208 = vadd.f32 %v181, %v207
    %v209 = vstv %s91
    %v210 = vmul.f32 %v142, %v209
    %v211 = vstv %s92
    %v212 = vmul.f32 %v145, %v211
    %v213 = vadd.f32 %v210, %v212
    %v214 = vstv %s93
    %v215 = vmul.f32 %v148, %v214
    %v216 = vadd.f32 %v213, %v215
    %v217 = vstv %s94
    %v218 = vmul.f32 %v151, %v217
    %v219 = vadd.f32 %v216, %v218
    %v220 = vstv %s113
    %v221 = vadd.f32 %v219, %v220
    %v222 = vsub.f32 0.0, %v221
    %v223 = vmul.f32 %v222, 1.442695
    %v224 = vpow.pop %v223
    %v225 = vadd.f32 %v224, 1.0
    %v226 = vrcp.pop %v225
    %v227 = vstv %s120
    %v228 = vmul.f32 %v226, %v227
    %v229 = vadd.f32 %v202, %v228
    %v230 = vstv %s127
    %v231 = vmul.f32 %v226, %v230
    %v232 = vadd.f32 %v205, %v231
    %v233 = vstv %s134
    %v234 = vmul.f32 %v226, %v233
    %v235 = vadd.f32 %v208, %v234
    %v236 = vstv %s95
    %v237 = vmul.f32 %v142, %v236
    %v238 = vstv %s96
    %v239 = vmul.f32 %v145, %v238
    %v240 = vadd.f32 %v237, %v239
    %v241 = vstv %s97
    %v242 = vmul.f32 %v148, %v241
    %v243 = vadd.f32 %v240, %v242
    %v244 = vstv %s98
    %v245 = vmul.f32 %v151, %v244
    %v246 = vadd.f32 %v243, %v245
    %v247 = vstv %s114
    %v248 = vadd.f32 %v246, %v247
    %v249 = vsub.f32 0.0, %v248
    %v250 = vmul.f32 %v249, 1.442695
    %v251 = vpow.pop %v250
    %v252 = vadd.f32 %v251, 1.0
    %v253 = vrcp.pop %v252
    %v254 = vstv %s121
    %v255 = vmul.f32 %v253, %v254
    %v256 = vadd.f32 %v229, %v255
    %v257 = vstv %s128
    %v258 = vmul.f32 %v253, %v257
    %v259 = vadd.f32 %v232, %v258
    %v260 = vstv %s135
    %v261 = vmul.f32 %v253, %v260
    %v262 = vadd.f32 %v235, %v261
    %v263 = vstv %s99
    %v264 = vmul.f32 %v142, %v263
    %v265 = vstv %s100
    %v266 = vmul.f32 %v145, %v265
    %v267 = vadd.f32 %v264, %v266
    %v268 = vstv %s101
    %v269 = vmul.f32 %v148, %v268
    %v270 = vadd.f32 %v267, %v269
    %v271 = vstv %s102
    %v272 = vmul.f32 %v151, %v271
    %v273 = vadd.f32 %v270, %v272
    %v274 = vstv %s115
    %v275 = vadd.f32 %v273, %v274
    %v276 = vsub.f32 0.0, %v275
    %v277 = vmul.f32 %v276, 1.442695
    %v278 = vpow.pop %v277
    %v279 = vadd.f32 %v278, 1.0
    %v280 = vrcp.pop %v279
    %v281 = vstv %s122
    %v282 = vmul.f32 %v280, %v281
    %v283 = vadd.f32 %v256, %v282
    %v284 = vstv %s129
    %v285 = vmul.f32 %v280, %v284
    %v286 = vadd.f32 %v259, %v285
    %v287 = vstv %s136
    %v288 = vmul.f32 %v280, %v287
    %v289 = vadd.f32 %v262, %v288
    %v290 = vstv %s103
    %v291 = vmul.f32 %v142, %v290
    %v292 = vstv %s104
    %v293 = vmul.f32 %v145, %v292
    %v294 = vadd.f32 %v291, %v293
    %v295 = vstv %s105
    %v296 = vmul.f32 %v148, %v295
    %v297 = vadd.f32 %v294, %v296
    %v298 = vstv %s106
    %v299 = vmul.f32 %v151, %v298
    %v300 = vadd.f32 %v297, %v299
    %v301 = vstv %s116
    %v302 = vadd.f32 %v300, %v301
    %v303 = vsub.f32 0.0, %v302
    %v304 = vmul.f32 %v303, 1.442695
    %v305 = vpow.pop %v304
    %v306 = vadd.f32 %v305, 1.0
    %v307 = vrcp.pop %v306
    %v308 = vstv %s123
    %v309 = vmul.f32 %v307, %v308
    %v310 = vadd.f32 %v283, %v309
    %v311 = vstv %s130
    %v312 = vmul.f32 %v307, %v311
    %v313 = vadd.f32 %v286, %v312
    %v314 = vstv %s137
    %v315 = vmul.f32 %v307, %v314
    %v316 = vadd.f32 %v289, %v315
    %v317 = vstv %s107
    %v318 = vmul.f32 %v142, %v317
    %v319 = vstv %s108
    %v320 = vmul.f32 %v145, %v319
    %v321 = vadd.f32 %v318, %v320
    %v322 = vstv %s109
    %v323 = vmul.f32 %v148, %v322
    %v324 = vadd.f32 %v321, %v323
    %v325 = vstv %s110
    %v326 = vmul.f32 %v151, %v325
    %v327 = vadd.f32 %v324, %v326
    %v328 = vstv %s117
    %v329 = vadd.f32 %v327, %v328
    %v330 = vsub.f32 0.0, %v329
    %v331 = vmul.f32 %v330, 1.442695
    %v332 = vpow.pop %v331
    %v333 = vadd.f32 %v332, 1.0
    %v334 = vrcp.pop %v333
    %v335 = vstv %s124
    %v336 = vmul.f32 %v334, %v335
    %v337 = vadd.f32 %v310, %v336
    %v338 = vstv %s131
    %v339 = vmul.f32 %v334, %v338
    %v340 = vadd.f32 %v313, %v339
    %v341 = vstv %s138
    %v342 = vmul.f32 %v334, %v341
    %v343 = vadd.f32 %v316, %v342
    %344 = vst [vmem:[#allocation12] sm:$0xff] %v337
    %s345 = scalar_lea.vmem [#allocation12], %s143
    %346 = vst [vmem:[%s345] sm:$0xff] %v340
    %s347 = scalar_lea.vmem [#allocation12], %s146
    %348 = vst [vmem:[%s347] sm:$0xff] %v343
    // Predicated region
    $region42: #{tpu_custom_call.1} parent=1 // pred_check
      _
    $region43: #{tpu_custom_call.1} parent=1 // pred_check_branch
      %350 = sbr.rel (0) target = $region45
    $region44: #{tpu_custom_call.1} parent=1 // pred_region
      %s352 = ssub.s32 384, 384
      %353 = vsyncadd [#allocation4], %s352
      %s354 = sshll.u32 [#allocation12], 4
      %s355 = int_to_ptr.vmem [resolvable:$true] %s354
      %360 = dma.vmem_to_hbm [thread:$0]  %s355, 384, %s5, [#allocation4], 128, 128, 8
    $region45: #{tpu_custom_call.1} parent=1 // pred_fallthru
      _
    // Predicated region
    $region46: #{tpu_custom_call.1} parent=1 // pred_check
      _
    $region47: #{tpu_custom_call.1} parent=1 // pred_check_branch
      %362 = sbr.rel (0) target = $region49
    $region48: #{tpu_custom_call.1} parent=1 // pred_region
      %363 = dma.done [#allocation4], 384
    $region49: #{tpu_custom_call.1} parent=1 // pred_fallthru
      _
    %364 = vsyncpa [#allocation3], 1
    %365 = vsyncpa [#allocation4], 1
    %366 = vsyncpa [#allocation5], 1
    %367 = vsyncpa [#allocation7], 1
    %368 = vsyncpa [#allocation10], 1

</llo_original>
